<compile_context>
chip_gen: v6e
topology: v6e:2x2x1
jax: 0.10.0
libtpu: 0.0.40
codegen_flags: <defaults>
</compile_context>

<pallas_src>
import functools

import jax
import jax.numpy as jnp
from jax.experimental import pallas as pl
from jax.experimental.pallas import tpu as pltpu

EPS = 1e-5  # nn.BatchNorm2d default eps


def _sepconv_kernel(x_ref, m_ref, w_ref, g_ref, b_ref, pw_ref, o_ref,
                    acc_ref, sum_ref, sumsq_ref, *, H, W, nb, count):
    """Fused depthwise 3x3 conv -> BatchNorm2d (batch stats) -> 1x1 conv.

    Grid = (phase, batch_block).  Phase 0 computes the depthwise conv for the
    nb batch elements of this block, caches it in VMEM scratch and accumulates
    per-row sum / sum-of-squares.  Phase 1 reads the cached activation, folds
    the BN scale/shift into the pointwise weights and emits the output.
    """
    p = pl.program_id(0)          # 0: statistics pass, 1: output pass
    j = pl.program_id(1)          # batch block
    HW = H * W
    nbc = x_ref.shape[0]          # nb * Cin rows per block
    Cin = nbc // nb
    Cout = pw_ref.shape[0]

    @pl.when(jnp.logical_and(p == 0, j == 0))
    def _init_stats():
        sum_ref[...] = jnp.zeros_like(sum_ref)
        sumsq_ref[...] = jnp.zeros_like(sumsq_ref)

    # ---- phase 0: depthwise conv + batch statistics, cache activation ------
    @pl.when(p == 0)
    def _stats_pass():
        xf = x_ref[...]                     # (nb*Cin, L), rows flattened + guards
        not_first = m_ref[0:1, :]           # (1, HW) kill wrapped left reads
        not_last = m_ref[1:2, :]            # (1, HW) kill wrapped right reads

        # 9 lane-shifted reads; per-row (nb*Cin, 1) tap weights broadcast along
        # lanes; column masks applied once per tap column.
        acc = jnp.zeros((nbc, HW), jnp.float32)
        for jj, mask in ((0, not_first), (1, None), (2, not_last)):
            col_acc = jnp.zeros((nbc, HW), jnp.float32)
            for ii in range(3):
                start = ii * W + jj
                col_acc = col_acc + xf[:, start:start + HW] * w_ref[ii * 3 + jj]
            acc = acc + (col_acc if mask is None else col_acc * mask)

        row0 = pl.multiple_of(j * nbc, nbc)
        acc_ref[pl.ds(row0, nbc), :] = acc          # cache for phase 1
        sum_ref[...] += jnp.sum(acc, axis=1, keepdims=True)
        sumsq_ref[...] += jnp.sum(acc * acc, axis=1, keepdims=True)

    # ---- phase 1: BN folded into the pointwise conv, emit output -----------
    @pl.when(p == 1)
    def _output_pass():
        # Fold the nb row-groups into per-channel statistics.
        s = sum_ref[0:Cin, :]
        q = sumsq_ref[0:Cin, :]
        for i in range(1, nb):
            s = s + sum_ref[i * Cin:(i + 1) * Cin, :]
            q = q + sumsq_ref[i * Cin:(i + 1) * Cin, :]
        inv_count = 1.0 / count
        mean = s * inv_count                                  # (Cin, 1)
        var = jnp.maximum(q * inv_count - mean * mean, 0.0)   # biased, clamped
        scale = g_ref[...] * jax.lax.rsqrt(var + EPS)         # (Cin, 1)
        shift = b_ref[...] - mean * scale                     # (Cin, 1)

        # Fold BN into the pointwise weights: O(Cout*Cin) work, no (Cin, HW)
        # a_bn temporary.
        pw_eff_cols = []
        bias_eff = jnp.zeros((Cout, 1), jnp.float32)
        for ci in range(Cin):
            pw_col = pw_ref[:, ci:ci + 1]                     # (Cout, 1)
            pw_eff_cols.append(pw_col * scale[ci:ci + 1, :])
            bias_eff = bias_eff + pw_col * shift[ci:ci + 1, :]

        row0 = pl.multiple_of(j * nbc, nbc)
        a = acc_ref[pl.ds(row0, nbc), :]                      # (nb*Cin, HW)

        # Pointwise conv as Cin rank-1 VPU updates (exact f32).  For large
        # channel counts replace with a bf16 MXU matmul:
        #   jnp.dot(pw_eff_bf16, a_bf16, preferred_element_type=jnp.float32)
        for i in range(nb):
            out = jnp.zeros((Cout, HW), jnp.float32)
            for ci in range(Cin):
                out = out + pw_eff_cols[ci] * a[i * Cin + ci:i * Cin + ci + 1, :]
            out = out + bias_eff
            o_ref[i * Cout:(i + 1) * Cout, :] = out


@jax.jit
def separable_conv2d(x_nchw, dw_w, pw_w, gamma, beta):
    """x_nchw: (N, Cin, H, W); dw_w: (Cin, 1, 3, 3) [PyTorch depthwise weight];
    pw_w: (Cout, Cin, 1, 1) [PyTorch pointwise weight]; gamma/beta: (Cin,)."""
    N, Cin, H, W = x_nchw.shape
    Cout = pw_w.shape[0]
    HW = H * W
    L = HW + 2 * W + 2

    # Batch tile so nb*Cin fills the 8 sublanes (nb=2 for Cin=4).
    nb = max(1, 8 // Cin)
    if N % nb != 0:
        nb = 1
    nb = min(nb, N)
    n_blocks = N // nb
    nbc = nb * Cin

    # Row-flattened NCHW input; one pad supplies the vertical zero rows plus
    # the lane guards: [guard + top row of W zeros | HW data | bottom row + guard].
    x2d = x_nchw.astype(jnp.float32).reshape(N * Cin, HW)
    xpad = jnp.pad(x2d, ((0, 0), (W + 1, W + 1)))             # (N*Cin, L)

    # Depthwise taps as 9 lane-broadcastable (nb*Cin, 1) columns (row r -> ch r%Cin).
    dw9 = jnp.tile(dw_w.reshape(Cin, 9).T.reshape(9, Cin, 1),
                   (1, nb, 1)).astype(jnp.float32)            # (9, nb*Cin, 1)
    pw2d = pw_w.reshape(Cout, Cin).astype(jnp.float32)
    g = gamma.reshape(Cin, 1).astype(jnp.float32)
    b = beta.reshape(Cin, 1).astype(jnp.float32)

    # Hoisted horizontal-padding column masks, resident in VMEM for the whole grid.
    col = jnp.arange(HW, dtype=jnp.int32) % W
    masks = jnp.stack([(col != 0), (col != W - 1)]).astype(jnp.float32)  # (2, HW)

    kernel = functools.partial(_sepconv_kernel, H=H, W=W, nb=nb,
                               count=float(N * HW))

    y = pl.pallas_call(
        kernel,
        out_shape=jax.ShapeDtypeStruct((N * Cout, HW), jnp.float32),
        grid=(2, n_blocks),
        in_specs=[
            # Activations: stream per block in phase 0; constant index in
            # phase 1 (phase 1 only uses the VMEM cache -> no re-streaming).
            pl.BlockSpec((nbc, L), lambda p, j: (jnp.where(p == 0, j, 0), 0)),
            pl.BlockSpec((2, HW), lambda p, j: (0, 0)),        # column masks
            pl.BlockSpec((9, nbc, 1), lambda p, j: (0, 0, 0)),  # dw taps
            pl.BlockSpec((Cin, 1), lambda p, j: (0, 0)),        # gamma
            pl.BlockSpec((Cin, 1), lambda p, j: (0, 0)),        # beta
            pl.BlockSpec((Cout, Cin), lambda p, j: (0, 0)),     # pw weight
        ],
        # Constant block index during phase 0 -> no stale output writebacks
        # while accumulating statistics.
        out_specs=pl.BlockSpec((nb * Cout, HW),
                               lambda p, j: (jnp.where(p == 0, 0, j), 0)),
        scratch_shapes=[
            pltpu.VMEM((N * Cin, HW), jnp.float32),   # cached depthwise output
            pltpu.VMEM((nbc, 1), jnp.float32),        # per-row sum
            pltpu.VMEM((nbc, 1), jnp.float32),        # per-row sum of squares
        ],
        compiler_params=pltpu.CompilerParams(
            dimension_semantics=("arbitrary", "arbitrary")),
    )(xpad, masks, dw9, g, b, pw2d)

    return y.reshape(N, Cout, H, W)   # already NCHW, just un-flatten spatial


# ---------------------------------------------------------------------------
# Pure-JAX reference (PyTorch semantics) for the correctness check.
# ---------------------------------------------------------------------------
def _reference(x_nchw, dw_w, pw_w, gamma, beta):
    Cin = x_nchw.shape[1]
    y = jax.lax.conv_general_dilated(
        x_nchw.astype(jnp.float32), dw_w.astype(jnp.float32),
        window_strides=(1, 1), padding=((1, 1), (1, 1)),
        feature_group_count=Cin,
        dimension_numbers=("NCHW", "OIHW", "NCHW"))
    mean = jnp.mean(y, axis=(0, 2, 3), keepdims=True)
    var = jnp.mean((y - mean) ** 2, axis=(0, 2, 3), keepdims=True)
    yn = (y - mean) * jax.lax.rsqrt(var + EPS)
    yn = yn * gamma[None, :, None, None] + beta[None, :, None, None]
    return jax.lax.conv_general_dilated(
        yn, pw_w.astype(jnp.float32),
        window_strides=(1, 1), padding=((0, 0), (0, 0)),
        dimension_numbers=("NCHW", "OIHW", "NCHW"))


if __name__ == "__main__":
    N, Cin, H, W = 2, 4, 16, 16   # inplanes = 4
    Cout = 8                      # planes = 8

    key = jax.random.PRNGKey(0)
    kx, kdw, kpw, kg, kb = jax.random.split(key, 5)

    x = jax.random.normal(kx, (N, Cin, H, W), dtype=jnp.float32)
    # depthwise weight: PyTorch shape (Cin, 1, 3, 3)
    dw_w = 0.1 * jax.random.normal(kdw, (Cin, 1, 3, 3), dtype=jnp.float32)
    # pointwise weight: PyTorch shape (Cout, Cin, 1, 1)
    pw_w = 0.1 * jax.random.normal(kpw, (Cout, Cin, 1, 1), dtype=jnp.float32)
    # BatchNorm2d affine params (non-trivial to exercise the full BN path)
    gamma = 1.0 + 0.1 * jax.random.normal(kg, (Cin,), dtype=jnp.float32)
    beta = 0.1 * jax.random.normal(kb, (Cin,), dtype=jnp.float32)

    out = jax.block_until_ready(separable_conv2d(x, dw_w, pw_w, gamma, beta))
    ref = jax.block_until_ready(_reference(x, dw_w, pw_w, gamma, beta))

    assert out.shape == (N, Cout, H, W), out.shape
    assert jnp.allclose(out, ref, atol=2e-4, rtol=2e-4), (
        float(jnp.max(jnp.abs(out - ref))))

    print("KERNEL_OK")
</pallas_src>

<mosaic_0001>
module attributes {stable_mosaic.version = 11 : i64} {
  func.func @_sepconv_kernel(%arg0: i32, %arg1: i32, %arg2: memref<8x290xf32, #tpu.memory_space<vmem>>, %arg3: memref<2x256xf32, #tpu.memory_space<vmem>>, %arg4: memref<9x8x1xf32, #tpu.memory_space<vmem>>, %arg5: memref<4x1xf32, #tpu.memory_space<vmem>>, %arg6: memref<4x1xf32, #tpu.memory_space<vmem>>, %arg7: memref<8x4xf32, #tpu.memory_space<vmem>>, %arg8: memref<16x256xf32, #tpu.memory_space<vmem>>, %arg9: memref<8x256xf32, #tpu.memory_space<vmem>>, %arg10: memref<8x1xf32, #tpu.memory_space<vmem>>, %arg11: memref<8x1xf32, #tpu.memory_space<vmem>>) attributes {dimension_semantics = [#tpu.dimension_semantics<arbitrary>, #tpu.dimension_semantics<arbitrary>], iteration_bounds = array<i64: 2, 1>, scalar_prefetch = 0 : i64, scratch_operands = 3 : i64, tpu.core_type = #tpu.core_type<tc>, window_params = [{transform_indices = @transform_0, window_bounds = array<i64: 8, 290>}, {pipeline_mode = #tpu.pipeline_mode<synchronous>, transform_indices = @transform_1, window_bounds = array<i64: 2, 256>}, {pipeline_mode = #tpu.pipeline_mode<synchronous>, transform_indices = @transform_2, window_bounds = array<i64: 9, 8, 1>}, {pipeline_mode = #tpu.pipeline_mode<synchronous>, transform_indices = @transform_3, window_bounds = array<i64: 4, 1>}, {pipeline_mode = #tpu.pipeline_mode<synchronous>, transform_indices = @transform_4, window_bounds = array<i64: 4, 1>}, {pipeline_mode = #tpu.pipeline_mode<synchronous>, transform_indices = @transform_5, window_bounds = array<i64: 8, 4>}, {transform_indices = @transform_6, window_bounds = array<i64: 16, 256>}]} {
    %c0_i32 = arith.constant 0 : i32
    %0 = arith.cmpi eq, %arg0, %c0_i32 : i32
    %c0_i32_0 = arith.constant 0 : i32
    %1 = arith.cmpi eq, %arg1, %c0_i32_0 : i32
    %2 = arith.andi %0, %1 : i1
    %3 = arith.extui %2 : i1 to i32
    %c0_i32_1 = arith.constant 0 : i32
    %4 = arith.cmpi ne, %3, %c0_i32_1 : i32
    scf.if %4 {
      %cst = arith.constant 0.000000e+00 : f32
      %11 = vector.broadcast %cst : f32 to vector<8x1xf32>
      %c0 = arith.constant 0 : index
      %c0_5 = arith.constant 0 : index
      %12 = vector.load %arg10[%c0, %c0_5] : memref<8x1xf32, #tpu.memory_space<vmem>>, vector<8x1xf32>
      tpu.vector_store %arg10[%c0, %c0_5], %11 {strides = array<i32>} : memref<8x1xf32, #tpu.memory_space<vmem>>, vector<8x1xf32>,
      %cst_6 = arith.constant 0.000000e+00 : f32
      %13 = vector.broadcast %cst_6 : f32 to vector<8x1xf32>
      %c0_7 = arith.constant 0 : index
      %c0_8 = arith.constant 0 : index
      %14 = vector.load %arg11[%c0_7, %c0_8] : memref<8x1xf32, #tpu.memory_space<vmem>>, vector<8x1xf32>
      tpu.vector_store %arg11[%c0_7, %c0_8], %13 {strides = array<i32>} : memref<8x1xf32, #tpu.memory_space<vmem>>, vector<8x1xf32>,
    } else {
    }
    %c0_i32_2 = arith.constant 0 : i32
    %5 = arith.cmpi eq, %arg0, %c0_i32_2 : i32
    %6 = arith.extui %5 : i1 to i32
    %c0_i32_3 = arith.constant 0 : i32
    %7 = arith.cmpi ne, %6, %c0_i32_3 : i32
    scf.if %7 {
      %c0 = arith.constant 0 : index
      %c0_5 = arith.constant 0 : index
      %11 = vector.load %arg2[%c0, %c0_5] : memref<8x290xf32, #tpu.memory_space<vmem>>, vector<8x290xf32>
      %c0_6 = arith.constant 0 : index
      %c0_7 = arith.constant 0 : index
      %12 = vector.load %arg3[%c0_6, %c0_7] : memref<2x256xf32, #tpu.memory_space<vmem>>, vector<1x256xf32>
      %c1 = arith.constant 1 : index
      %c0_8 = arith.constant 0 : index
      %13 = vector.load %arg3[%c1, %c0_8] : memref<2x256xf32, #tpu.memory_space<vmem>>, vector<1x256xf32>
      %cst = arith.constant 0.000000e+00 : f32
      %14 = vector.broadcast %cst : f32 to vector<8x256xf32>
      %cst_9 = arith.constant 0.000000e+00 : f32
      %15 = vector.broadcast %cst_9 : f32 to vector<8x256xf32>
      %16 = vector.extract_strided_slice %11 {offsets = [0, 0], sizes = [8, 256], strides = [1, 1]} : vector<8x290xf32> to vector<8x256xf32>
      %c0_10 = arith.constant 0 : index
      %c0_11 = arith.constant 0 : index
      %c0_12 = arith.constant 0 : index
      %17 = vector.load %arg4[%c0_10, %c0_11, %c0_12] : memref<9x8x1xf32, #tpu.memory_space<vmem>>, vector<1x8x1xf32>
      %18 = vector.shape_cast %17 : vector<1x8x1xf32> to vector<8x1xf32>
      %19 = vector.broadcast %18 : vector<8x1xf32> to vector<8x256xf32>
      %20 = arith.mulf %16, %19 : vector<8x256xf32>
      %21 = arith.addf %15, %20 : vector<8x256xf32>
      %22 = vector.extract_strided_slice %11 {offsets = [0, 16], sizes = [8, 256], strides = [1, 1]} : vector<8x290xf32> to vector<8x256xf32>
      %c3 = arith.constant 3 : index
      %c0_13 = arith.constant 0 : index
      %c0_14 = arith.constant 0 : index
      %23 = vector.load %arg4[%c3, %c0_13, %c0_14] : memref<9x8x1xf32, #tpu.memory_space<vmem>>, vector<1x8x1xf32>
      %24 = vector.shape_cast %23 : vector<1x8x1xf32> to vector<8x1xf32>
      %25 = vector.broadcast %24 : vector<8x1xf32> to vector<8x256xf32>
      %26 = arith.mulf %22, %25 : vector<8x256xf32>
      %27 = arith.addf %21, %26 : vector<8x256xf32>
      %28 = vector.extract_strided_slice %11 {offsets = [0, 32], sizes = [8, 256], strides = [1, 1]} : vector<8x290xf32> to vector<8x256xf32>
      %c6 = arith.constant 6 : index
      %c0_15 = arith.constant 0 : index
      %c0_16 = arith.constant 0 : index
      %29 = vector.load %arg4[%c6, %c0_15, %c0_16] : memref<9x8x1xf32, #tpu.memory_space<vmem>>, vector<1x8x1xf32>
      %30 = vector.shape_cast %29 : vector<1x8x1xf32> to vector<8x1xf32>
      %31 = vector.broadcast %30 : vector<8x1xf32> to vector<8x256xf32>
      %32 = arith.mulf %28, %31 : vector<8x256xf32>
      %33 = arith.addf %27, %32 : vector<8x256xf32>
      %34 = vector.broadcast %12 : vector<1x256xf32> to vector<8x256xf32>
      %35 = arith.mulf %33, %34 : vector<8x256xf32>
      %36 = arith.addf %14, %35 : vector<8x256xf32>
      %cst_17 = arith.constant 0.000000e+00 : f32
      %37 = vector.broadcast %cst_17 : f32 to vector<8x256xf32>
      %38 = vector.extract_strided_slice %11 {offsets = [0, 1], sizes = [8, 256], strides = [1, 1]} : vector<8x290xf32> to vector<8x256xf32>
      %c1_18 = arith.constant 1 : index
      %c0_19 = arith.constant 0 : index
      %c0_20 = arith.constant 0 : index
      %39 = vector.load %arg4[%c1_18, %c0_19, %c0_20] : memref<9x8x1xf32, #tpu.memory_space<vmem>>, vector<1x8x1xf32>
      %40 = vector.shape_cast %39 : vector<1x8x1xf32> to vector<8x1xf32>
      %41 = vector.broadcast %40 : vector<8x1xf32> to vector<8x256xf32>
      %42 = arith.mulf %38, %41 : vector<8x256xf32>
      %43 = arith.addf %37, %42 : vector<8x256xf32>
      %44 = vector.extract_strided_slice %11 {offsets = [0, 17], sizes = [8, 256], strides = [1, 1]} : vector<8x290xf32> to vector<8x256xf32>
      %c4 = arith.constant 4 : index
      %c0_21 = arith.constant 0 : index
      %c0_22 = arith.constant 0 : index
      %45 = vector.load %arg4[%c4, %c0_21, %c0_22] : memref<9x8x1xf32, #tpu.memory_space<vmem>>, vector<1x8x1xf32>
      %46 = vector.shape_cast %45 : vector<1x8x1xf32> to vector<8x1xf32>
      %47 = vector.broadcast %46 : vector<8x1xf32> to vector<8x256xf32>
      %48 = arith.mulf %44, %47 : vector<8x256xf32>
      %49 = arith.addf %43, %48 : vector<8x256xf32>
      %50 = vector.extract_strided_slice %11 {offsets = [0, 33], sizes = [8, 256], strides = [1, 1]} : vector<8x290xf32> to vector<8x256xf32>
      %c7 = arith.constant 7 : index
      %c0_23 = arith.constant 0 : index
      %c0_24 = arith.constant 0 : index
      %51 = vector.load %arg4[%c7, %c0_23, %c0_24] : memref<9x8x1xf32, #tpu.memory_space<vmem>>, vector<1x8x1xf32>
      %52 = vector.shape_cast %51 : vector<1x8x1xf32> to vector<8x1xf32>
      %53 = vector.broadcast %52 : vector<8x1xf32> to vector<8x256xf32>
      %54 = arith.mulf %50, %53 : vector<8x256xf32>
      %55 = arith.addf %49, %54 : vector<8x256xf32>
      %56 = arith.addf %36, %55 : vector<8x256xf32>
      %cst_25 = arith.constant 0.000000e+00 : f32
      %57 = vector.broadcast %cst_25 : f32 to vector<8x256xf32>
      %58 = vector.extract_strided_slice %11 {offsets = [0, 2], sizes = [8, 256], strides = [1, 1]} : vector<8x290xf32> to vector<8x256xf32>
      %c2 = arith.constant 2 : index
      %c0_26 = arith.constant 0 : index
      %c0_27 = arith.constant 0 : index
      %59 = vector.load %arg4[%c2, %c0_26, %c0_27] : memref<9x8x1xf32, #tpu.memory_space<vmem>>, vector<1x8x1xf32>
      %60 = vector.shape_cast %59 : vector<1x8x1xf32> to vector<8x1xf32>
      %61 = vector.broadcast %60 : vector<8x1xf32> to vector<8x256xf32>
      %62 = arith.mulf %58, %61 : vector<8x256xf32>
      %63 = arith.addf %57, %62 : vector<8x256xf32>
      %64 = vector.extract_strided_slice %11 {offsets = [0, 18], sizes = [8, 256], strides = [1, 1]} : vector<8x290xf32> to vector<8x256xf32>
      %c5 = arith.constant 5 : index
      %c0_28 = arith.constant 0 : index
      %c0_29 = arith.constant 0 : index
      %65 = vector.load %arg4[%c5, %c0_28, %c0_29] : memref<9x8x1xf32, #tpu.memory_space<vmem>>, vector<1x8x1xf32>
      %66 = vector.shape_cast %65 : vector<1x8x1xf32> to vector<8x1xf32>
      %67 = vector.broadcast %66 : vector<8x1xf32> to vector<8x256xf32>
      %68 = arith.mulf %64, %67 : vector<8x256xf32>
      %69 = arith.addf %63, %68 : vector<8x256xf32>
      %70 = vector.extract_strided_slice %11 {offsets = [0, 34], sizes = [8, 256], strides = [1, 1]} : vector<8x290xf32> to vector<8x256xf32>
      %c8 = arith.constant 8 : index
      %c0_30 = arith.constant 0 : index
      %c0_31 = arith.constant 0 : index
      %71 = vector.load %arg4[%c8, %c0_30, %c0_31] : memref<9x8x1xf32, #tpu.memory_space<vmem>>, vector<1x8x1xf32>
      %72 = vector.shape_cast %71 : vector<1x8x1xf32> to vector<8x1xf32>
      %73 = vector.broadcast %72 : vector<8x1xf32> to vector<8x256xf32>
      %74 = arith.mulf %70, %73 : vector<8x256xf32>
      %75 = arith.addf %69, %74 : vector<8x256xf32>
      %76 = vector.broadcast %13 : vector<1x256xf32> to vector<8x256xf32>
      %77 = arith.mulf %75, %76 : vector<8x256xf32>
      %78 = arith.addf %56, %77 : vector<8x256xf32>
      %c8_i32 = arith.constant 8 : i32
      %79 = arith.muli %arg1, %c8_i32 : i32
      %80 = tpu.assume_multiple %79, 8 : i32
      %81 = arith.index_cast %80 : i32 to index
      %c0_32 = arith.constant 0 : index
      %82 = vector.load %arg9[%81, %c0_32] : memref<8x256xf32, #tpu.memory_space<vmem>>, vector<8x256xf32>
      tpu.vector_store %arg9[%81, %c0_32], %78 {strides = array<i32>} : memref<8x256xf32, #tpu.memory_space<vmem>>, vector<8x256xf32>,
      %c0_33 = arith.constant 0 : index
      %c0_34 = arith.constant 0 : index
      %83 = vector.load %arg10[%c0_33, %c0_34] : memref<8x1xf32, #tpu.memory_space<vmem>>, vector<8x1xf32>
      %cst_35 = arith.constant dense<0.000000e+00> : vector<8xf32>
      %84 = vector.multi_reduction <add>, %78, %cst_35 [1] : vector<8x256xf32> to vector<8xf32>
      %85 = vector.shape_cast %84 : vector<8xf32> to vector<8x1xf32>
      %86 = arith.addf %83, %85 : vector<8x1xf32>
      %c0_36 = arith.constant 0 : index
      %c0_37 = arith.constant 0 : index
      %87 = vector.load %arg10[%c0_36, %c0_37] : memref<8x1xf32, #tpu.memory_space<vmem>>, vector<8x1xf32>
      tpu.vector_store %arg10[%c0_36, %c0_37], %86 {strides = array<i32>} : memref<8x1xf32, #tpu.memory_space<vmem>>, vector<8x1xf32>,
      %c0_38 = arith.constant 0 : index
      %c0_39 = arith.constant 0 : index
      %88 = vector.load %arg11[%c0_38, %c0_39] : memref<8x1xf32, #tpu.memory_space<vmem>>, vector<8x1xf32>
      %89 = arith.mulf %78, %78 : vector<8x256xf32>
      %cst_40 = arith.constant dense<0.000000e+00> : vector<8xf32>
      %90 = vector.multi_reduction <add>, %89, %cst_40 [1] : vector<8x256xf32> to vector<8xf32>
      %91 = vector.shape_cast %90 : vector<8xf32> to vector<8x1xf32>
      %92 = arith.addf %88, %91 : vector<8x1xf32>
      %c0_41 = arith.constant 0 : index
      %c0_42 = arith.constant 0 : index
      %93 = vector.load %arg11[%c0_41, %c0_42] : memref<8x1xf32, #tpu.memory_space<vmem>>, vector<8x1xf32>
      tpu.vector_store %arg11[%c0_41, %c0_42], %92 {strides = array<i32>} : memref<8x1xf32, #tpu.memory_space<vmem>>, vector<8x1xf32>,
    } else {
    }
    %c1_i32 = arith.constant 1 : i32
    %8 = arith.cmpi eq, %arg0, %c1_i32 : i32
    %9 = arith.extui %8 : i1 to i32
    %c0_i32_4 = arith.constant 0 : i32
    %10 = arith.cmpi ne, %9, %c0_i32_4 : i32
    scf.if %10 {
      %c0 = arith.constant 0 : index
      %c0_5 = arith.constant 0 : index
      %11 = vector.load %arg10[%c0, %c0_5] : memref<8x1xf32, #tpu.memory_space<vmem>>, vector<4x1xf32>
      %c0_6 = arith.constant 0 : index
      %c0_7 = arith.constant 0 : index
      %12 = vector.load %arg11[%c0_6, %c0_7] : memref<8x1xf32, #tpu.memory_space<vmem>>, vector<4x1xf32>
      %c4 = arith.constant 4 : index
      %c0_8 = arith.constant 0 : index
      %13 = vector.load %arg10[%c4, %c0_8] : memref<8x1xf32, #tpu.memory_space<vmem>>, vector<4x1xf32>
      %14 = arith.addf %11, %13 : vector<4x1xf32>
      %c4_9 = arith.constant 4 : index
      %c0_10 = arith.constant 0 : index
      %15 = vector.load %arg11[%c4_9, %c0_10] : memref<8x1xf32, #tpu.memory_space<vmem>>, vector<4x1xf32>
      %16 = arith.addf %12, %15 : vector<4x1xf32>
      %cst = arith.constant 0.001953125 : f32
      %17 = vector.broadcast %cst : f32 to vector<4x1xf32>
      %18 = arith.mulf %14, %17 : vector<4x1xf32>
      %cst_11 = arith.constant 0.001953125 : f32
      %19 = vector.broadcast %cst_11 : f32 to vector<4x1xf32>
      %20 = arith.mulf %16, %19 : vector<4x1xf32>
      %21 = arith.mulf %18, %18 : vector<4x1xf32>
      %22 = arith.subf %20, %21 : vector<4x1xf32>
      %cst_12 = arith.constant 0.000000e+00 : f32
      %23 = vector.broadcast %cst_12 : f32 to vector<4x1xf32>
      %24 = arith.maximumf %22, %23 : vector<4x1xf32>
      %c0_13 = arith.constant 0 : index
      %c0_14 = arith.constant 0 : index
      %25 = vector.load %arg5[%c0_13, %c0_14] : memref<4x1xf32, #tpu.memory_space<vmem>>, vector<4x1xf32>
      %cst_15 = arith.constant 9.99999974E-6 : f32
      %26 = vector.broadcast %cst_15 : f32 to vector<4x1xf32>
      %27 = arith.addf %24, %26 : vector<4x1xf32>
      %28 = math.rsqrt %27 : vector<4x1xf32>
      %29 = arith.mulf %25, %28 : vector<4x1xf32>
      %c0_16 = arith.constant 0 : index
      %c0_17 = arith.constant 0 : index
      %30 = vector.load %arg6[%c0_16, %c0_17] : memref<4x1xf32, #tpu.memory_space<vmem>>, vector<4x1xf32>
      %31 = arith.mulf %18, %29 : vector<4x1xf32>
      %32 = arith.subf %30, %31 : vector<4x1xf32>
      %cst_18 = arith.constant 0.000000e+00 : f32
      %33 = vector.broadcast %cst_18 : f32 to vector<8x1xf32>
      %c0_19 = arith.constant 0 : index
      %c0_20 = arith.constant 0 : index
      %34 = vector.load %arg7[%c0_19, %c0_20] : memref<8x4xf32, #tpu.memory_space<vmem>>, vector<8x1xf32>
      %35 = vector.extract_strided_slice %29 {offsets = [0, 0], sizes = [1, 1], strides = [1, 1]} : vector<4x1xf32> to vector<1x1xf32>
      %36 = vector.broadcast %35 : vector<1x1xf32> to vector<8x1xf32>
      %37 = arith.mulf %34, %36 : vector<8x1xf32>
      %38 = vector.extract_strided_slice %32 {offsets = [0, 0], sizes = [1, 1], strides = [1, 1]} : vector<4x1xf32> to vector<1x1xf32>
      %39 = vector.broadcast %38 : vector<1x1xf32> to vector<8x1xf32>
      %40 = arith.mulf %34, %39 : vector<8x1xf32>
      %41 = arith.addf %33, %40 : vector<8x1xf32>
      %c0_21 = arith.constant 0 : index
      %c1 = arith.constant 1 : index
      %42 = vector.load %arg7[%c0_21, %c1] : memref<8x4xf32, #tpu.memory_space<vmem>>, vector<8x1xf32>
      %43 = vector.extract_strided_slice %29 {offsets = [1, 0], sizes = [1, 1], strides = [1, 1]} : vector<4x1xf32> to vector<1x1xf32>
      %44 = vector.broadcast %43 : vector<1x1xf32> to vector<8x1xf32>
      %45 = arith.mulf %42, %44 : vector<8x1xf32>
      %46 = vector.extract_strided_slice %32 {offsets = [1, 0], sizes = [1, 1], strides = [1, 1]} : vector<4x1xf32> to vector<1x1xf32>
      %47 = vector.broadcast %46 : vector<1x1xf32> to vector<8x1xf32>
      %48 = arith.mulf %42, %47 : vector<8x1xf32>
      %49 = arith.addf %41, %48 : vector<8x1xf32>
      %c0_22 = arith.constant 0 : index
      %c2 = arith.constant 2 : index
      %50 = vector.load %arg7[%c0_22, %c2] : memref<8x4xf32, #tpu.memory_space<vmem>>, vector<8x1xf32>
      %51 = vector.extract_strided_slice %29 {offsets = [2, 0], sizes = [1, 1], strides = [1, 1]} : vector<4x1xf32> to vector<1x1xf32>
      %52 = vector.broadcast %51 : vector<1x1xf32> to vector<8x1xf32>
      %53 = arith.mulf %50, %52 : vector<8x1xf32>
      %54 = vector.extract_strided_slice %32 {offsets = [2, 0], sizes = [1, 1], strides = [1, 1]} : vector<4x1xf32> to vector<1x1xf32>
      %55 = vector.broadcast %54 : vector<1x1xf32> to vector<8x1xf32>
      %56 = arith.mulf %50, %55 : vector<8x1xf32>
      %57 = arith.addf %49, %56 : vector<8x1xf32>
      %c0_23 = arith.constant 0 : index
      %c3 = arith.constant 3 : index
      %58 = vector.load %arg7[%c0_23, %c3] : memref<8x4xf32, #tpu.memory_space<vmem>>, vector<8x1xf32>
      %59 = vector.extract_strided_slice %29 {offsets = [3, 0], sizes = [1, 1], strides = [1, 1]} : vector<4x1xf32> to vector<1x1xf32>
      %60 = vector.broadcast %59 : vector<1x1xf32> to vector<8x1xf32>
      %61 = arith.mulf %58, %60 : vector<8x1xf32>
      %62 = vector.extract_strided_slice %32 {offsets = [3, 0], sizes = [1, 1], strides = [1, 1]} : vector<4x1xf32> to vector<1x1xf32>
      %63 = vector.broadcast %62 : vector<1x1xf32> to vector<8x1xf32>
      %64 = arith.mulf %58, %63 : vector<8x1xf32>
      %65 = arith.addf %57, %64 : vector<8x1xf32>
      %c8_i32 = arith.constant 8 : i32
      %66 = arith.muli %arg1, %c8_i32 : i32
      %67 = tpu.assume_multiple %66, 8 : i32
      %68 = arith.index_cast %67 : i32 to index
      %c0_24 = arith.constant 0 : index
      %69 = vector.load %arg9[%68, %c0_24] : memref<8x256xf32, #tpu.memory_space<vmem>>, vector<8x256xf32>
      %cst_25 = arith.constant 0.000000e+00 : f32
      %70 = vector.broadcast %cst_25 : f32 to vector<8x256xf32>
      %71 = vector.extract_strided_slice %69 {offsets = [0, 0], sizes = [1, 256], strides = [1, 1]} : vector<8x256xf32> to vector<1x256xf32>
      %72 = vector.broadcast %37 : vector<8x1xf32> to vector<8x256xf32>
      %73 = vector.broadcast %71 : vector<1x256xf32> to vector<8x256xf32>
      %74 = arith.mulf %72, %73 : vector<8x256xf32>
      %75 = arith.addf %70, %74 : vector<8x256xf32>
      %76 = vector.extract_strided_slice %69 {offsets = [1, 0], sizes = [1, 256], strides = [1, 1]} : vector<8x256xf32> to vector<1x256xf32>
      %77 = vector.broadcast %45 : vector<8x1xf32> to vector<8x256xf32>
      %78 = vector.broadcast %76 : vector<1x256xf32> to vector<8x256xf32>
      %79 = arith.mulf %77, %78 : vector<8x256xf32>
      %80 = arith.addf %75, %79 : vector<8x256xf32>
      %81 = vector.extract_strided_slice %69 {offsets = [2, 0], sizes = [1, 256], strides = [1, 1]} : vector<8x256xf32> to vector<1x256xf32>
      %82 = vector.broadcast %53 : vector<8x1xf32> to vector<8x256xf32>
      %83 = vector.broadcast %81 : vector<1x256xf32> to vector<8x256xf32>
      %84 = arith.mulf %82, %83 : vector<8x256xf32>
      %85 = arith.addf %80, %84 : vector<8x256xf32>
      %86 = vector.extract_strided_slice %69 {offsets = [3, 0], sizes = [1, 256], strides = [1, 1]} : vector<8x256xf32> to vector<1x256xf32>
      %87 = vector.broadcast %61 : vector<8x1xf32> to vector<8x256xf32>
      %88 = vector.broadcast %86 : vector<1x256xf32> to vector<8x256xf32>
      %89 = arith.mulf %87, %88 : vector<8x256xf32>
      %90 = arith.addf %85, %89 : vector<8x256xf32>
      %91 = vector.broadcast %65 : vector<8x1xf32> to vector<8x256xf32>
      %92 = arith.addf %90, %91 : vector<8x256xf32>
      %c0_26 = arith.constant 0 : index
      %c0_27 = arith.constant 0 : index
      %93 = vector.load %arg8[%c0_26, %c0_27] : memref<16x256xf32, #tpu.memory_space<vmem>>, vector<8x256xf32>
      tpu.vector_store %arg8[%c0_26, %c0_27], %92 {strides = array<i32>} : memref<16x256xf32, #tpu.memory_space<vmem>>, vector<8x256xf32>,
      %cst_28 = arith.constant 0.000000e+00 : f32
      %94 = vector.broadcast %cst_28 : f32 to vector<8x256xf32>
      %95 = vector.extract_strided_slice %69 {offsets = [4, 0], sizes = [1, 256], strides = [1, 1]} : vector<8x256xf32> to vector<1x256xf32>
      %96 = vector.broadcast %37 : vector<8x1xf32> to vector<8x256xf32>
      %97 = vector.broadcast %95 : vector<1x256xf32> to vector<8x256xf32>
      %98 = arith.mulf %96, %97 : vector<8x256xf32>
      %99 = arith.addf %94, %98 : vector<8x256xf32>
      %100 = vector.extract_strided_slice %69 {offsets = [5, 0], sizes = [1, 256], strides = [1, 1]} : vector<8x256xf32> to vector<1x256xf32>
      %101 = vector.broadcast %45 : vector<8x1xf32> to vector<8x256xf32>
      %102 = vector.broadcast %100 : vector<1x256xf32> to vector<8x256xf32>
      %103 = arith.mulf %101, %102 : vector<8x256xf32>
      %104 = arith.addf %99, %103 : vector<8x256xf32>
      %105 = vector.extract_strided_slice %69 {offsets = [6, 0], sizes = [1, 256], strides = [1, 1]} : vector<8x256xf32> to vector<1x256xf32>
      %106 = vector.broadcast %53 : vector<8x1xf32> to vector<8x256xf32>
      %107 = vector.broadcast %105 : vector<1x256xf32> to vector<8x256xf32>
      %108 = arith.mulf %106, %107 : vector<8x256xf32>
      %109 = arith.addf %104, %108 : vector<8x256xf32>
      %110 = vector.extract_strided_slice %69 {offsets = [7, 0], sizes = [1, 256], strides = [1, 1]} : vector<8x256xf32> to vector<1x256xf32>
      %111 = vector.broadcast %61 : vector<8x1xf32> to vector<8x256xf32>
      %112 = vector.broadcast %110 : vector<1x256xf32> to vector<8x256xf32>
      %113 = arith.mulf %111, %112 : vector<8x256xf32>
      %114 = arith.addf %109, %113 : vector<8x256xf32>
      %115 = vector.broadcast %65 : vector<8x1xf32> to vector<8x256xf32>
      %116 = arith.addf %114, %115 : vector<8x256xf32>
      %c8 = arith.constant 8 : index
      %c0_29 = arith.constant 0 : index
      %117 = vector.load %arg8[%c8, %c0_29] : memref<16x256xf32, #tpu.memory_space<vmem>>, vector<8x256xf32>
      tpu.vector_store %arg8[%c8, %c0_29], %116 {strides = array<i32>} : memref<16x256xf32, #tpu.memory_space<vmem>>, vector<8x256xf32>,
    } else {
    }
    return
  }
  func.func @transform_0(%arg0: i32, %arg1: i32) -> (i32, i32) {
    %c0_i32 = arith.constant 0 : i32
    %0 = arith.cmpi eq, %arg0, %c0_i32 : i32
    %c0_i32_0 = arith.constant 0 : i32
    %1 = arith.select %0, %arg1, %c0_i32_0 : i32
    %c0_i32_1 = arith.constant 0 : i32
    %c0_i32_2 = arith.constant 0 : i32
    return %1, %c0_i32_1 : i32, i32
  }
  func.func @transform_1(%arg0: i32, %arg1: i32) -> (i32, i32) {
    %c0_i32 = arith.constant 0 : i32
    %c0_i32_0 = arith.constant 0 : i32
    %c0_i32_1 = arith.constant 0 : i32
    return %c0_i32, %c0_i32_0 : i32, i32
  }
  func.func @transform_2(%arg0: i32, %arg1: i32) -> (i32, i32, i32) {
    %c0_i32 = arith.constant 0 : i32
    %c0_i32_0 = arith.constant 0 : i32
    %c0_i32_1 = arith.constant 0 : i32
    %c0_i32_2 = arith.constant 0 : i32
    return %c0_i32, %c0_i32_0, %c0_i32_1 : i32, i32, i32
  }
  func.func @transform_3(%arg0: i32, %arg1: i32) -> (i32, i32) {
    %c0_i32 = arith.constant 0 : i32
    %c0_i32_0 = arith.constant 0 : i32
    %c0_i32_1 = arith.constant 0 : i32
    return %c0_i32, %c0_i32_0 : i32, i32
  }
  func.func @transform_4(%arg0: i32, %arg1: i32) -> (i32, i32) {
    %c0_i32 = arith.constant 0 : i32
    %c0_i32_0 = arith.constant 0 : i32
    %c0_i32_1 = arith.constant 0 : i32
    return %c0_i32, %c0_i32_0 : i32, i32
  }
  func.func @transform_5(%arg0: i32, %arg1: i32) -> (i32, i32) {
    %c0_i32 = arith.constant 0 : i32
    %c0_i32_0 = arith.constant 0 : i32
    %c0_i32_1 = arith.constant 0 : i32
    return %c0_i32, %c0_i32_0 : i32, i32
  }
  func.func @transform_6(%arg0: i32, %arg1: i32) -> (i32, i32) {
    %c0_i32 = arith.constant 0 : i32
    %0 = arith.cmpi eq, %arg0, %c0_i32 : i32
    %c0_i32_0 = arith.constant 0 : i32
    %1 = arith.select %0, %c0_i32_0, %arg1 : i32
    %c0_i32_1 = arith.constant 0 : i32
    %c0_i32_2 = arith.constant 0 : i32
    return %1, %c0_i32_1 : i32, i32
  }
}

</mosaic_0001>

<llo_original>
// kernel: separable_conv2d.1
$region0: #{separable_conv2d.1}
  #allocation0 [shape = 'u32[]', space=smem, size = 0x4, offset = 0x4, fixed_abs, tag = 'smem constant byte address 0x4 - core index']
  #allocation1 [shape = 'u32[144,128]{1,0:T(1,128)}', space=vmem, size = 0x12000, scoped, tag = 'internal scratch']
  #allocation2 [shape = 'f32[8,256]{1,0:T(8,128)}', space=vmem, size = 0x2000, scoped, tag = 'scratch operand']
  #allocation3 [shape = 'f32[8,1]{1,0:T(8,128)}', space=vmem, size = 0x1000, scoped, tag = 'scratch operand']
  #allocation4 [shape = 'f32[8,1]{1,0:T(8,128)}', space=vmem, size = 0x1000, scoped, tag = 'scratch operand']
  %s0 = inlined_call_operand.vmem [shape: f32[8,290], index: 0, kind: input, shape index: {}]
  %s1 = inlined_call_operand.vmem [shape: f32[2,256], index: 1, kind: input, shape index: {}]
  %s2 = inlined_call_operand.vmem [shape: f32[9,8,1], index: 2, kind: input, shape index: {}]
  %s3 = inlined_call_operand.vmem [shape: f32[4,1], index: 3, kind: input, shape index: {}]
  %s4 = inlined_call_operand.vmem [shape: f32[4,1], index: 4, kind: input, shape index: {}]
  %s5 = inlined_call_operand.vmem [shape: f32[8,4], index: 5, kind: input, shape index: {}]
  %s6 = inlined_call_operand.vmem [shape: f32[16,256], index: 6, kind: output, shape index: {}]
  %s7 = sld [smem:[#allocation0]]
  $region69: #{separable_conv2d.1} parent=0
    _
  %s9 = ssub.s32 1, %s7
  %s10 = scalar_select 0, %s9, %s7
  loop: start=0, step=1, limit=4
  $region2: #{separable_conv2d.1} parent=0 // loop_pre_header
    _
  $region3: #{separable_conv2d.1} parent=0 // loop_header
    %s12 = sphi 0, %s16
    %p13 = scmp.ge.s32.totalorder %s12, 4
    %s19 = sphi 0, %s31
    %s20 = sphi 0, %s27
    %s21 = sphi 0, %s19
    %s22 = sphi 0, %s20
    %s23 = sphi 0, %s21
    %s24 = sphi 0, %s22
    %s38 = sphi 0, %s40
    %s41 = sphi 0, %s38
    %s42 = sphi 0, %s41
    %s58 = sphi 0, %s42
    %s62 = sphi 0, %s62
    %s64 = sphi 0, %s62
    %s65 = sphi 0, %s64
    %s79 = sphi 0, %s65
    %s83 = sphi 0, %s83
    %s85 = sphi 0, %s83
    %s86 = sphi 0, %s85
    %s100 = sphi 0, %s86
    %s104 = sphi 0, %s104
    %s106 = sphi 0, %s104
    %s107 = sphi 0, %s106
    %s121 = sphi 0, %s107
    %s125 = sphi 0, %s125
    %s127 = sphi 0, %s125
    %s128 = sphi 0, %s127
    %s142 = sphi 0, %s128
    %s146 = sphi 0, %s146
    %s148 = sphi 0, %s146
    %s149 = sphi 0, %s148
    %s163 = sphi 0, %s149
    %s173 = sphi 0, %s175
    %s176 = sphi 0, %s173
    %s177 = sphi 0, %s176
    %s193 = sphi 0, %s177
  $region4: #{separable_conv2d.1} parent=0 // loop_header_branch
    %15 = sbr.rel (%p13) target = $region8
  $region5: #{separable_conv2d.1} parent=0 // loop_body
    %s17 = ssub.s32 %s12, 1
    %s18 = ssub.s32 %s12, 2
    %s25 = sadd.s32 1, %s20
    %p26 = scmp.ge.s32.totalorder %s25, 1
    %s27 = scalar_select %p26, 0, %s25
    %s28 = sadd.s32 1, %s19
    %s29 = scalar_select %p26, %s28, %s19
    %p30 = scmp.ge.s32.totalorder %s29, 2
    %s31 = scalar_select %p30, 0, %s29
    %p32 = scmp.eq.s32.totalorder %s19, 0
    %s33 = scalar_select %p32, %s20, 0
    %p34 = scmp.eq.s32.totalorder %s31, 0
    %s35 = scalar_select %p34, %s27, 0
    %s36 = ssub.s32 %s33, %s35
    %p37 = scmp.eq.s32.totalorder %s36, 0
    %s39 = sadd.s32 %s38, 1
    %s40 = scalar_select %p37, %s38, %s39
    %p43 = pneg %p37
    %p44 = scmp.eq.s32.totalorder %s12, 1
    %p45 = por %p43, %p44
    %p46 = scmp.ne.s32.totalorder %s38, %s41
    %p47 = scmp.eq.s32.totalorder %s12, 0
    %p48 = por %p46, %p47
    %p49 = scmp.ne.s32.totalorder %s38, %s41
    %p50 = scmp.eq.s32.totalorder %s17, 1
    %p51 = por %p49, %p50
    %p52 = scmp.ne.s32.totalorder %s41, %s42
    %p53 = scmp.eq.s32.totalorder %s17, 0
    %p54 = por %p52, %p53
    %p55 = scmp.ne.s32.totalorder %s41, %s42
    %p56 = scmp.eq.s32.totalorder %s18, 1
    %p57 = por %p55, %p56
    %p59 = scmp.ne.s32.totalorder %s42, %s58
    %p60 = scmp.eq.s32.totalorder %s18, 0
    %p61 = por %p59, %p60
    %s63 = sadd.s32 %s62, 1
    %p66 = scmp.eq.s32.totalorder %s12, 1
    %p67 = scmp.ne.s32.totalorder %s62, %s64
    %p68 = scmp.eq.s32.totalorder %s12, 0
    %p69 = por %p67, %p68
    %p70 = scmp.ne.s32.totalorder %s62, %s64
    %p71 = scmp.eq.s32.totalorder %s17, 1
    %p72 = por %p70, %p71
    %p73 = scmp.ne.s32.totalorder %s64, %s65
    %p74 = scmp.eq.s32.totalorder %s17, 0
    %p75 = por %p73, %p74
    %p76 = scmp.ne.s32.totalorder %s64, %s65
    %p77 = scmp.eq.s32.totalorder %s18, 1
    %p78 = por %p76, %p77
    %p80 = scmp.ne.s32.totalorder %s65, %s79
    %p81 = scmp.eq.s32.totalorder %s18, 0
    %p82 = por %p80, %p81
    %s84 = sadd.s32 %s83, 1
    %p87 = scmp.eq.s32.totalorder %s12, 1
    %p88 = scmp.ne.s32.totalorder %s83, %s85
    %p89 = scmp.eq.s32.totalorder %s12, 0
    %p90 = por %p88, %p89
    %p91 = scmp.ne.s32.totalorder %s83, %s85
    %p92 = scmp.eq.s32.totalorder %s17, 1
    %p93 = por %p91, %p92
    %p94 = scmp.ne.s32.totalorder %s85, %s86
    %p95 = scmp.eq.s32.totalorder %s17, 0
    %p96 = por %p94, %p95
    %p97 = scmp.ne.s32.totalorder %s85, %s86
    %p98 = scmp.eq.s32.totalorder %s18, 1
    %p99 = por %p97, %p98
    %p101 = scmp.ne.s32.totalorder %s86, %s100
    %p102 = scmp.eq.s32.totalorder %s18, 0
    %p103 = por %p101, %p102
    %s105 = sadd.s32 %s104, 1
    %p108 = scmp.eq.s32.totalorder %s12, 1
    %p109 = scmp.ne.s32.totalorder %s104, %s106
    %p110 = scmp.eq.s32.totalorder %s12, 0
    %p111 = por %p109, %p110
    %p112 = scmp.ne.s32.totalorder %s104, %s106
    %p113 = scmp.eq.s32.totalorder %s17, 1
    %p114 = por %p112, %p113
    %p115 = scmp.ne.s32.totalorder %s106, %s107
    %p116 = scmp.eq.s32.totalorder %s17, 0
    %p117 = por %p115, %p116
    %p118 = scmp.ne.s32.totalorder %s106, %s107
    %p119 = scmp.eq.s32.totalorder %s18, 1
    %p120 = por %p118, %p119
    %p122 = scmp.ne.s32.totalorder %s107, %s121
    %p123 = scmp.eq.s32.totalorder %s18, 0
    %p124 = por %p122, %p123
    %s126 = sadd.s32 %s125, 1
    %p129 = scmp.eq.s32.totalorder %s12, 1
    %p130 = scmp.ne.s32.totalorder %s125, %s127
    %p131 = scmp.eq.s32.totalorder %s12, 0
    %p132 = por %p130, %p131
    %p133 = scmp.ne.s32.totalorder %s125, %s127
    %p134 = scmp.eq.s32.totalorder %s17, 1
    %p135 = por %p133, %p134
    %p136 = scmp.ne.s32.totalorder %s127, %s128
    %p137 = scmp.eq.s32.totalorder %s17, 0
    %p138 = por %p136, %p137
    %p139 = scmp.ne.s32.totalorder %s127, %s128
    %p140 = scmp.eq.s32.totalorder %s18, 1
    %p141 = por %p139, %p140
    %p143 = scmp.ne.s32.totalorder %s128, %s142
    %p144 = scmp.eq.s32.totalorder %s18, 0
    %p145 = por %p143, %p144
    %s147 = sadd.s32 %s146, 1
    %p150 = scmp.eq.s32.totalorder %s12, 1
    %p151 = scmp.ne.s32.totalorder %s146, %s148
    %p152 = scmp.eq.s32.totalorder %s12, 0
    %p153 = por %p151, %p152
    %p154 = scmp.ne.s32.totalorder %s146, %s148
    %p155 = scmp.eq.s32.totalorder %s17, 1
    %p156 = por %p154, %p155
    %p157 = scmp.ne.s32.totalorder %s148, %s149
    %p158 = scmp.eq.s32.totalorder %s17, 0
    %p159 = por %p157, %p158
    %p160 = scmp.ne.s32.totalorder %s148, %s149
    %p161 = scmp.eq.s32.totalorder %s18, 1
    %p162 = por %p160, %p161
    %p164 = scmp.ne.s32.totalorder %s149, %s163
    %p165 = scmp.eq.s32.totalorder %s18, 0
    %p166 = por %p164, %p165
    %p167 = scmp.eq.s32.totalorder %s19, 0
    %s168 = scalar_select %p167, 0, %s20
    %p169 = scmp.eq.s32.totalorder %s31, 0
    %s170 = scalar_select %p169, 0, %s27
    %s171 = ssub.s32 %s168, %s170
    %p172 = scmp.eq.s32.totalorder %s171, 0
    %s174 = sadd.s32 %s173, 1
    %s175 = scalar_select %p172, %s173, %s174
    %p178 = pneg %p172
    %p179 = scmp.eq.s32.totalorder %s12, 1
    %p180 = por %p178, %p179
    %p181 = scmp.ne.s32.totalorder %s173, %s176
    %p182 = scmp.eq.s32.totalorder %s12, 0
    %p183 = por %p181, %p182
    %p184 = scmp.ne.s32.totalorder %s173, %s176
    %p185 = scmp.eq.s32.totalorder %s17, 1
    %p186 = por %p184, %p185
    %p187 = scmp.ne.s32.totalorder %s176, %s177
    %p188 = scmp.eq.s32.totalorder %s17, 0
    %p189 = por %p187, %p188
    %p190 = scmp.ne.s32.totalorder %s176, %s177
    %p191 = scmp.eq.s32.totalorder %s18, 1
    %p192 = por %p190, %p191
    %p194 = scmp.ne.s32.totalorder %s177, %s193
    %p195 = scmp.eq.s32.totalorder %s18, 0
    %p196 = por %p194, %p195
    %p197 = scmp.le.s32.totalorder 1, %s12
    %p198 = scmp.lt.s32.totalorder %s12, 3
    %p199 = pnand %p197, %p198
    %p200 = pneg %p199
    // Predicated region
    $region9: #{separable_conv2d.1} parent=5 // pred_check
      _
    $region10: #{separable_conv2d.1} parent=5 // pred_check_branch
      %202 = sbr.rel (%p199) target = $region12
    $region11: #{separable_conv2d.1} parent=5 // pred_region
      %s203 = ssub.s32 %s12, 1
      // Predicated region
      $region13: #{separable_conv2d.1} parent=11 // pred_check
        %p204 = pneg %p75
      $region14: #{separable_conv2d.1} parent=11 // pred_check_branch
        %206 = sbr.rel (%p204) target = $region16
      $region15: #{separable_conv2d.1} parent=11 // pred_region
        _
      $region16: #{separable_conv2d.1} parent=11 // pred_fallthru
        _
      // Predicated region
      $region17: #{separable_conv2d.1} parent=11 // pred_check
        %p207 = pneg %p96
      $region18: #{separable_conv2d.1} parent=11 // pred_check_branch
        %209 = sbr.rel (%p207) target = $region20
      $region19: #{separable_conv2d.1} parent=11 // pred_region
        _
      $region20: #{separable_conv2d.1} parent=11 // pred_fallthru
        _
      // Predicated region
      $region21: #{separable_conv2d.1} parent=11 // pred_check
        %p210 = pneg %p117
      $region22: #{separable_conv2d.1} parent=11 // pred_check_branch
        %212 = sbr.rel (%p210) target = $region24
      $region23: #{separable_conv2d.1} parent=11 // pred_region
        _
      $region24: #{separable_conv2d.1} parent=11 // pred_fallthru
        _
      // Predicated region
      $region25: #{separable_conv2d.1} parent=11 // pred_check
        %p213 = pneg %p138
      $region26: #{separable_conv2d.1} parent=11 // pred_check_branch
        %215 = sbr.rel (%p213) target = $region28
      $region27: #{separable_conv2d.1} parent=11 // pred_region
        _
      $region28: #{separable_conv2d.1} parent=11 // pred_fallthru
        _
      // Predicated region
      $region29: #{separable_conv2d.1} parent=11 // pred_check
        %p216 = pneg %p159
      $region30: #{separable_conv2d.1} parent=11 // pred_check_branch
        %218 = sbr.rel (%p216) target = $region32
      $region31: #{separable_conv2d.1} parent=11 // pred_region
        _
      $region32: #{separable_conv2d.1} parent=11 // pred_fallthru
        _
    $region12: #{separable_conv2d.1} parent=5 // pred_fallthru
      _
    %p219 = scmp.lt.s32.totalorder %s12, 2
    // Predicated region
    $region33: #{separable_conv2d.1} parent=5 // pred_check
      %p220 = pneg %p219
    $region34: #{separable_conv2d.1} parent=5 // pred_check_branch
      %222 = sbr.rel (%p220) target = $region36
    $region35: #{separable_conv2d.1} parent=5 // pred_region
      // Predicated region
      $region37: #{separable_conv2d.1} parent=35 // pred_check
        %p223 = pneg %p48
      $region38: #{separable_conv2d.1} parent=35 // pred_check_branch
        %225 = sbr.rel (%p223) target = $region40
      $region39: #{separable_conv2d.1} parent=35 // pred_region
        %p226 = scmp.eq.s32.totalorder %s19, 0
        %s227 = scalar_select %p226, %s20, 0
        %p228 = scmp.lt.s32.totalorder %s227, 0
        %s229 = scalar_select %p228, %s227, 0
        %s230 = smul.addr %s229, 3
        %s231 = smul.addr %s230, 8
        %s232 = scalar_lea.vmem %s0, %s231
        %p233 = scmp.eq.s32.totalorder %s19, 0
        %s234 = scalar_select %p233, %s20, 0
      $region40: #{separable_conv2d.1} parent=35 // pred_fallthru
        _
    $region36: #{separable_conv2d.1} parent=5 // pred_fallthru
      _
    %p235 = scmp.le.s32.totalorder 1, %s12
    %p236 = scmp.lt.s32.totalorder %s12, 3
    %p237 = pnand %p235, %p236
    %p238 = pneg %p237
    // Predicated region
    $region41: #{separable_conv2d.1} parent=5 // pred_check
      _
    $region42: #{separable_conv2d.1} parent=5 // pred_check_branch
      %240 = sbr.rel (%p237) target = $region44
    $region43: #{separable_conv2d.1} parent=5 // pred_region
      %s241 = ssub.s32 %s12, 1
      %p242 = scmp.eq.s32.totalorder %s21, 0
      %s243 = scalar_select %p242, %s22, 0
      %p244 = scmp.lt.s32.totalorder %s243, 0
      %s245 = scalar_select %p244, %s243, 0
      %s246 = smul.addr %s245, 3
      %s247 = smul.addr %s246, 8
      %s248 = scalar_lea.vmem %s0, %s247
      %p249 = pneg %p54
      %p250 = pneg %p51
      %p251 = pneg %p75
      %p252 = pneg %p72
      %p253 = pneg %p96
      %p254 = pneg %p93
      %p255 = pneg %p117
      %p256 = pneg %p114
      %p257 = pneg %p138
      %p258 = pneg %p135
      %p259 = pneg %p159
      %p260 = pneg %p156
      %p261 = pneg %p189
      %p262 = pneg %p186
      %p263 = scmp.eq.s32.totalorder %s21, 0
      %s264 = scalar_select %p263, 0, %s22
      %s265 = smul.u32 2, %s264
      %p266 = scmp.lt.s32.totalorder %s265, 1
      %s267 = scalar_select %p266, %s265, 1
      %s268 = smul.addr %s267, 2
      %s269 = smul.addr %s268, 8
      %s270 = scalar_lea.vmem %s6, %s269
      %p271 = scmp.eq.s32.totalorder %s21, 0
      %s272 = scalar_select %p271, %s22, 0
      %p273 = scmp.lt.s32.totalorder %s272, 0
      %s274 = scalar_select %p273, %s272, 0
      %s275 = smul.addr %s274, 3
      %s276 = smul.addr %s275, 8
      %s277 = scalar_lea.vmem %s0, %s276
      %p278 = scmp.eq.s32.totalorder %s21, 0
      %s279 = scalar_select %p278, %s22, 0
      %p280 = scmp.eq.s32.totalorder %s21, 0
      %s281 = scalar_select %p280, 0, %s22
      %s282 = smul.u32 2, %s281
      %p283 = scmp.lt.s32.totalorder %s282, 1
      %s284 = scalar_select %p283, %s282, 1
      %s285 = smul.addr %s284, 2
      %s286 = smul.addr %s285, 8
      %s287 = scalar_lea.vmem %s6, %s286
      %p288 = scmp.eq.s32.totalorder %s21, 0
      %s289 = scalar_select %p288, 0, %s22
      %s290 = smul.u32 2, %s289
      %p291 = scmp.eq.s32.totalorder %s21, 0
      %p292 = scmp.eq.s32.totalorder %s22, 0
      %p293 = pnand %p291, %p292
      %p294 = pneg %p293
      // Predicated region
      $region45: #{separable_conv2d.1} parent=43 // pred_check
        _
      $region46: #{separable_conv2d.1} parent=43 // pred_check_branch
        %296 = sbr.rel (%p293) target = $region48
      $region47: #{separable_conv2d.1} parent=43 // pred_region
        %vm297 = vcmask 7168
        %298 = vst.msk [vmem:[#allocation3] sm:$0xff] %vm297, 0.0
        %299 = vst.msk [vmem:[#allocation4] sm:$0xff] %vm297, 0.0
      $region48: #{separable_conv2d.1} parent=43 // pred_fallthru
        _
      // Predicated region
      $region49: #{separable_conv2d.1} parent=43 // pred_check
        %p300 = pneg %p291
      $region50: #{separable_conv2d.1} parent=43 // pred_check_branch
        %302 = sbr.rel (%p300) target = $region52
      $region51: #{separable_conv2d.1} parent=43 // pred_region
        %v303 = vld [vmem:[%s277] sm:$0xff]
        %v304 = vld [vmem:[%s277 + $0x8] sm:$0xff]
        %v305 = vld [vmem:[%s277 + $0x10] sm:$0xff]
        %v306 = vld [vmem:[%s1] ss:$2 sm:$0x3]
        %s307 = scalar_lea.vmem %s1, 1
        %v308 = vld [vmem:[%s307] ss:$2 sm:$0x3]
        %v309 = vld [vmem:[%s2] sm:$0xff]
        %311 = vset.pattern.permute.xlu0 0
        %312 = vperm.xlu0 %311, %v309
        %v313 = vpop.permute.xlu0 %312
        %v315 = vmul.f32 %v303, %v313
        %v316 = vmul.f32 %v304, %v313
        %v317 = vadd.f32 %v315, 0.0
        %v318 = vadd.f32 %v316, 0.0
        %s319 = scalar_lea.vmem %s2, 24
        %v320 = vld [vmem:[%s319] sm:$0xff]
        %322 = vset.pattern.permute.xlu0 0
        %323 = vperm.xlu0 %322, %v320
        %v324 = vpop.permute.xlu0 %323
        %v326 = vmul.f32 %v303, %v324
        %v327 = vmul.f32 %v304, %v324
        %v328 = vmul.f32 %v305, %v324
        %332 = vrot.lane.b32.xlu0 %v326, 112
        %v333 = vpop.permute.xlu0 %332
        %334 = vrot.lane.b32.xlu0 %v327, 112
        %v335 = vpop.permute.xlu0 %334
        %336 = vrot.lane.b32.xlu0 %v328, 112
        %v337 = vpop.permute.xlu0 %336
        %vm338 = vcmask 916480
        %v339 = vsel %vm338, %v333, %v335
        %v340 = vsel %vm338, %v335, %v337
        %v343 = vadd.f32 %v317, %v339
        %v344 = vadd.f32 %v318, %v340
        %s345 = scalar_lea.vmem %s2, 48
        %v346 = vld [vmem:[%s345] sm:$0xff]
        %348 = vset.pattern.permute.xlu0 0
        %349 = vperm.xlu0 %348, %v346
        %v350 = vpop.permute.xlu0 %349
        %v352 = vmul.f32 %v303, %v350
        %v353 = vmul.f32 %v304, %v350
        %v354 = vmul.f32 %v305, %v350
        %358 = vrot.lane.b32.xlu0 %v352, 96
        %v359 = vpop.permute.xlu0 %358
        %360 = vrot.lane.b32.xlu0 %v353, 96
        %v361 = vpop.permute.xlu0 %360
        %362 = vrot.lane.b32.xlu0 %v354, 96
        %v363 = vpop.permute.xlu0 %362
        %vm364 = vcmask 785408
        %v365 = vsel %vm364, %v359, %v361
        %v366 = vsel %vm364, %v361, %v363
        %v369 = vadd.f32 %v343, %v365
        %v370 = vadd.f32 %v344, %v366
        %v372 = vlaneseq
        %v373 = vshrl.u32 %v372, 7
        %v374 = vsub.s32 0, %v373
        %v375 = vrot.slane %v306, %v374
        %v376 = vlaneseq
        %v377 = vshrl.u32 %v376, 7
        %v378 = vsub.s32 1, %v377
        %v379 = vrot.slane %v306, %v378
        %v382 = vmul.f32 %v369, %v375
        %v383 = vmul.f32 %v370, %v379
        %v384 = vadd.f32 %v382, 0.0
        %v385 = vadd.f32 %v383, 0.0
        %s386 = scalar_lea.vmem %s2, 8
        %v387 = vld [vmem:[%s386] sm:$0xff]
        %389 = vset.pattern.permute.xlu0 0
        %390 = vperm.xlu0 %389, %v387
        %v391 = vpop.permute.xlu0 %390
        %v393 = vmul.f32 %v303, %v391
        %v394 = vmul.f32 %v304, %v391
        %v395 = vmul.f32 %v305, %v391
        %v396 = vadd.f32 %v393, 0.0
        %v397 = vadd.f32 %v394, 0.0
        %v398 = vadd.f32 %v395, 0.0
        %s399 = scalar_lea.vmem %s2, 32
        %v400 = vld [vmem:[%s399] sm:$0xff]
        %402 = vset.pattern.permute.xlu0 0
        %403 = vperm.xlu0 %402, %v400
        %v404 = vpop.permute.xlu0 %403
        %v406 = vmul.f32 %v303, %v404
        %v407 = vmul.f32 %v304, %v404
        %v408 = vmul.f32 %v305, %v404
        %412 = vrot.lane.b32.xlu0 %v406, 112
        %v413 = vpop.permute.xlu0 %412
        %414 = vrot.lane.b32.xlu0 %v407, 112
        %v415 = vpop.permute.xlu0 %414
        %416 = vrot.lane.b32.xlu0 %v408, 112
        %v417 = vpop.permute.xlu0 %416
        %v418 = vsel %vm338, %v413, %v415
        %v419 = vsel %vm338, %v415, %v417
        %v423 = vadd.f32 %v396, %v418
        %v424 = vadd.f32 %v397, %v419
        %v425 = vadd.f32 %v398, %v417
        %s426 = scalar_lea.vmem %s2, 56
        %v427 = vld [vmem:[%s426] sm:$0xff]
        %429 = vset.pattern.permute.xlu0 0
        %430 = vperm.xlu0 %429, %v427
        %v431 = vpop.permute.xlu0 %430
        %v433 = vmul.f32 %v303, %v431
        %v434 = vmul.f32 %v304, %v431
        %v435 = vmul.f32 %v305, %v431
        %439 = vrot.lane.b32.xlu0 %v433, 96
        %v440 = vpop.permute.xlu0 %439
        %441 = vrot.lane.b32.xlu0 %v434, 96
        %v442 = vpop.permute.xlu0 %441
        %443 = vrot.lane.b32.xlu0 %v435, 96
        %v444 = vpop.permute.xlu0 %443
        %v445 = vsel %vm364, %v440, %v442
        %v446 = vsel %vm364, %v442, %v444
        %v450 = vadd.f32 %v423, %v445
        %v451 = vadd.f32 %v424, %v446
        %v452 = vadd.f32 %v425, %v444
        %456 = vrot.lane.b32.xlu0 %v450, 127
        %v457 = vpop.permute.xlu0 %456
        %458 = vrot.lane.b32.xlu0 %v451, 127
        %v459 = vpop.permute.xlu0 %458
        %460 = vrot.lane.b32.xlu0 %v452, 127
        %v461 = vpop.permute.xlu0 %460
        %vm462 = vcmask 1039360
        %v463 = vsel %vm462, %v457, %v459
        %v464 = vsel %vm462, %v459, %v461
        %v467 = vadd.f32 %v384, %v463
        %v468 = vadd.f32 %v385, %v464
        %s469 = scalar_lea.vmem %s2, 16
        %v470 = vld [vmem:[%s469] sm:$0xff]
        %472 = vset.pattern.permute.xlu0 0
        %473 = vperm.xlu0 %472, %v470
        %v474 = vpop.permute.xlu0 %473
        %v476 = vmul.f32 %v303, %v474
        %v477 = vmul.f32 %v304, %v474
        %v478 = vmul.f32 %v305, %v474
        %v479 = vadd.f32 %v476, 0.0
        %v480 = vadd.f32 %v477, 0.0
        %v481 = vadd.f32 %v478, 0.0
        %s482 = scalar_lea.vmem %s2, 40
        %v483 = vld [vmem:[%s482] sm:$0xff]
        %485 = vset.pattern.permute.xlu0 0
        %486 = vperm.xlu0 %485, %v483
        %v487 = vpop.permute.xlu0 %486
        %v489 = vmul.f32 %v303, %v487
        %v490 = vmul.f32 %v304, %v487
        %v491 = vmul.f32 %v305, %v487
        %495 = vrot.lane.b32.xlu0 %v489, 112
        %v496 = vpop.permute.xlu0 %495
        %497 = vrot.lane.b32.xlu0 %v490, 112
        %v498 = vpop.permute.xlu0 %497
        %499 = vrot.lane.b32.xlu0 %v491, 112
        %v500 = vpop.permute.xlu0 %499
        %v501 = vsel %vm338, %v496, %v498
        %v502 = vsel %vm338, %v498, %v500
        %v506 = vadd.f32 %v479, %v501
        %v507 = vadd.f32 %v480, %v502
        %v508 = vadd.f32 %v481, %v500
        %s509 = scalar_lea.vmem %s2, 64
        %v510 = vld [vmem:[%s509] sm:$0xff]
        %512 = vset.pattern.permute.xlu0 0
        %513 = vperm.xlu0 %512, %v510
        %v514 = vpop.permute.xlu0 %513
        %v516 = vmul.f32 %v303, %v514
        %v517 = vmul.f32 %v304, %v514
        %v518 = vmul.f32 %v305, %v514
        %522 = vrot.lane.b32.xlu0 %v516, 96
        %v523 = vpop.permute.xlu0 %522
        %524 = vrot.lane.b32.xlu0 %v517, 96
        %v525 = vpop.permute.xlu0 %524
        %526 = vrot.lane.b32.xlu0 %v518, 96
        %v527 = vpop.permute.xlu0 %526
        %v528 = vsel %vm364, %v523, %v525
        %v529 = vsel %vm364, %v525, %v527
        %v533 = vadd.f32 %v506, %v528
        %v534 = vadd.f32 %v507, %v529
        %v535 = vadd.f32 %v508, %v527
        %v537 = vlaneseq
        %v538 = vshrl.u32 %v537, 7
        %v539 = vsub.s32 0, %v538
        %v540 = vrot.slane %v308, %v539
        %v541 = vlaneseq
        %v542 = vshrl.u32 %v541, 7
        %v543 = vsub.s32 1, %v542
        %v544 = vrot.slane %v308, %v543
        %545 = vrot.lane.b32.xlu0 %v540, 2
        %v546 = vpop.permute.xlu0 %545
        %547 = vrot.lane.b32.xlu0 %v544, 2
        %v548 = vpop.permute.xlu0 %547
        %vm549 = vcmask 15360
        %v550 = vsel %vm549, %v546, %v548
        %v554 = vmul.f32 %v533, %v546
        %v555 = vmul.f32 %v534, %v550
        %v556 = vmul.f32 %v535, %v548
        %560 = vrot.lane.b32.xlu0 %v554, 126
        %v561 = vpop.permute.xlu0 %560
        %562 = vrot.lane.b32.xlu0 %v555, 126
        %v563 = vpop.permute.xlu0 %562
        %564 = vrot.lane.b32.xlu0 %v556, 126
        %v565 = vpop.permute.xlu0 %564
        %vm566 = vcmask 1031168
        %v567 = vsel %vm566, %v561, %v563
        %v568 = vsel %vm566, %v563, %v565
        %v571 = vadd.f32 %v467, %v567
        %v572 = vadd.f32 %v468, %v568
        %s573 = smul.u32 %s22, 8
        %s574 = sshra.s32 %s573, 3
        %s575 = sand.u32 %s573, 7
        %s576 = smul.u32 %s574, 2
        %s577 = smul.addr %s576, 8
        %s578 = scalar_lea.vmem [#allocation2], %s577
        %579 = vst [vmem:[%s578] sm:$0xff] %v571
        %580 = vst [vmem:[%s578 + $0x8] sm:$0xff] %v572
        %v581 = vld [vmem:[#allocation3] sm:$0xff]
        %v582 = vadd.f32 %v571, %v572
        %583 = vadd.xlane.f32.xlu0 %v582
        %v584 = vpop.xlane.xlu0 %583
        %v585 = vadd.f32 %v581, %v584
        %vm586 = vcmask 7168
        %587 = vst.msk [vmem:[#allocation3] sm:$0xff] %vm586, %v585
        %v588 = vld [vmem:[#allocation4] sm:$0xff]
        %v589 = vmul.f32 %v571, %v571
        %v590 = vmul.f32 %v572, %v572
        %v591 = vadd.f32 %v589, %v590
        %592 = vadd.xlane.f32.xlu0 %v591
        %v593 = vpop.xlane.xlu0 %592
        %v594 = vadd.f32 %v588, %v593
        %595 = vst.msk [vmem:[#allocation4] sm:$0xff] %vm586, %v594
      $region52: #{separable_conv2d.1} parent=43 // pred_fallthru
        _
      %p596 = scmp.eq.s32.totalorder %s21, 1
      // Predicated region
      $region53: #{separable_conv2d.1} parent=43 // pred_check
        %p597 = pneg %p596
      $region54: #{separable_conv2d.1} parent=43 // pred_check_branch
        %599 = sbr.rel (%p597) target = $region56
      $region55: #{separable_conv2d.1} parent=43 // pred_region
        %v600 = vld [vmem:[#allocation3] sm:$0xf]
        %v601 = vld [vmem:[#allocation4] sm:$0xf]
        %v602 = vld [vmem:[#allocation3 + $0x4] sm:$0xf]
        %v603 = vadd.f32 %v600, %v602
        %v604 = vld [vmem:[#allocation4 + $0x4] sm:$0xf]
        %v605 = vadd.f32 %v601, %v604
        %v606 = vmul.f32 %v603, 0.001953125
        %v607 = vmul.f32 %v605, 0.001953125
        %v608 = vmul.f32 %v606, %v606
        %v609 = vsub.f32 %v607, %v608
        %v610 = vmax.f32 %v609, 0.0
        %v611 = vld [vmem:[%s3] sm:$0xf]
        %v612 = vadd.f32 %v610, 1e-05
        %v613 = vrsqrt.pop %v612
        %v614 = vmul.f32 %v611, %v613
        %v615 = vld [vmem:[%s4] sm:$0xf]
        %v616 = vmul.f32 %v606, %v614
        %v617 = vsub.f32 %v615, %v616
        %v618 = vld [vmem:[%s5] sm:$0xff]
        %v619 = vlaneseq
        %v620 = vshrl.u32 %v619, 7
        %v621 = vsub.s32 0, %v620
        %v622 = vrot.slane %v614, %v621
        %v623 = vmul.f32 %v618, %v622
        %v624 = vlaneseq
        %v625 = vshrl.u32 %v624, 7
        %v626 = vsub.s32 0, %v625
        %v627 = vrot.slane %v617, %v626
        %v628 = vmul.f32 %v618, %v627
        %v629 = vadd.f32 %v628, 0.0
        %v630 = vlaneseq
        %v631 = vshrl.u32 %v630, 7
        %v632 = vsub.s32 1, %v631
        %v633 = vrot.slane %v614, %v632
        %635 = vrot.lane.b32.xlu0 %v633, 1
        %v636 = vpop.permute.xlu0 %635
        %v638 = vmul.f32 %v618, %v636
        %v639 = vlaneseq
        %v640 = vshrl.u32 %v639, 7
        %v641 = vsub.s32 1, %v640
        %v642 = vrot.slane %v617, %v641
        %644 = vrot.lane.b32.xlu0 %v642, 1
        %v645 = vpop.permute.xlu0 %644
        %v647 = vmul.f32 %v618, %v645
        %649 = vrot.lane.b32.xlu0 %v647, 127
        %v650 = vpop.permute.xlu0 %649
        %v652 = vadd.f32 %v629, %v650
        %v653 = vlaneseq
        %v654 = vshrl.u32 %v653, 7
        %v655 = vsub.s32 2, %v654
        %v656 = vrot.slane %v614, %v655
        %658 = vrot.lane.b32.xlu0 %v656, 2
        %v659 = vpop.permute.xlu0 %658
        %v661 = vmul.f32 %v618, %v659
        %v662 = vlaneseq
        %v663 = vshrl.u32 %v662, 7
        %v664 = vsub.s32 2, %v663
        %v665 = vrot.slane %v617, %v664
        %667 = vrot.lane.b32.xlu0 %v665, 2
        %v668 = vpop.permute.xlu0 %667
        %v670 = vmul.f32 %v618, %v668
        %672 = vrot.lane.b32.xlu0 %v670, 126
        %v673 = vpop.permute.xlu0 %672
        %v675 = vadd.f32 %v652, %v673
        %v676 = vlaneseq
        %v677 = vshrl.u32 %v676, 7
        %v678 = vsub.s32 3, %v677
        %v679 = vrot.slane %v614, %v678
        %681 = vrot.lane.b32.xlu0 %v679, 3
        %v682 = vpop.permute.xlu0 %681
        %v684 = vmul.f32 %v618, %v682
        %v685 = vlaneseq
        %v686 = vshrl.u32 %v685, 7
        %v687 = vsub.s32 3, %v686
        %v688 = vrot.slane %v617, %v687
        %690 = vrot.lane.b32.xlu0 %v688, 3
        %v691 = vpop.permute.xlu0 %690
        %v693 = vmul.f32 %v618, %v691
        %695 = vrot.lane.b32.xlu0 %v693, 125
        %v696 = vpop.permute.xlu0 %695
        %v698 = vadd.f32 %v675, %v696
        %s699 = smul.u32 %s22, 8
        %s700 = sshra.s32 %s699, 3
        %s701 = sand.u32 %s699, 7
        %s702 = smul.u32 %s700, 2
        %s703 = smul.addr %s702, 8
        %s704 = scalar_lea.vmem [#allocation2], %s703
        %v705 = vld [vmem:[%s704] sm:$0xff]
        %v706 = vld [vmem:[%s704 + $0x8] sm:$0xff]
        %708 = vset.pattern.permute.xlu0 0
        %709 = vperm.xlu0 %708, %v623
        %v710 = vpop.permute.xlu0 %709
        %v712 = vlaneseq
        %v713 = vshrl.u32 %v712, 7
        %v714 = vsub.s32 0, %v713
        %v715 = vrot.slane %v705, %v714
        %v716 = vlaneseq
        %v717 = vshrl.u32 %v716, 7
        %v718 = vsub.s32 0, %v717
        %v719 = vrot.slane %v706, %v718
        %v720 = vmul.f32 %v710, %v715
        %v721 = vmul.f32 %v710, %v719
        %v722 = vadd.f32 %v720, 0.0
        %v723 = vadd.f32 %v721, 0.0
        %725 = vset.pattern.permute.xlu0 1
        %726 = vperm.xlu0 %725, %v638
        %v727 = vpop.permute.xlu0 %726
        %v729 = vlaneseq
        %v730 = vshrl.u32 %v729, 7
        %v731 = vsub.s32 1, %v730
        %v732 = vrot.slane %v705, %v731
        %v733 = vlaneseq
        %v734 = vshrl.u32 %v733, 7
        %v735 = vsub.s32 1, %v734
        %v736 = vrot.slane %v706, %v735
        %v737 = vmul.f32 %v727, %v732
        %v738 = vmul.f32 %v727, %v736
        %v739 = vadd.f32 %v722, %v737
        %v740 = vadd.f32 %v723, %v738
        %742 = vset.pattern.permute.xlu0 2
        %743 = vperm.xlu0 %742, %v661
        %v744 = vpop.permute.xlu0 %743
        %v746 = vlaneseq
        %v747 = vshrl.u32 %v746, 7
        %v748 = vsub.s32 2, %v747
        %v749 = vrot.slane %v705, %v748
        %v750 = vlaneseq
        %v751 = vshrl.u32 %v750, 7
        %v752 = vsub.s32 2, %v751
        %v753 = vrot.slane %v706, %v752
        %v754 = vmul.f32 %v744, %v749
        %v755 = vmul.f32 %v744, %v753
        %v756 = vadd.f32 %v739, %v754
        %v757 = vadd.f32 %v740, %v755
        %759 = vset.pattern.permute.xlu0 3
        %760 = vperm.xlu0 %759, %v684
        %v761 = vpop.permute.xlu0 %760
        %v763 = vlaneseq
        %v764 = vshrl.u32 %v763, 7
        %v765 = vsub.s32 3, %v764
        %v766 = vrot.slane %v705, %v765
        %v767 = vlaneseq
        %v768 = vshrl.u32 %v767, 7
        %v769 = vsub.s32 3, %v768
        %v770 = vrot.slane %v706, %v769
        %v771 = vmul.f32 %v761, %v766
        %v772 = vmul.f32 %v761, %v770
        %v773 = vadd.f32 %v756, %v771
        %v774 = vadd.f32 %v757, %v772
        %776 = vset.pattern.permute.xlu0 0
        %777 = vperm.xlu0 %776, %v698
        %v778 = vpop.permute.xlu0 %777
        %v780 = vadd.f32 %v773, %v778
        %v781 = vadd.f32 %v774, %v778
        %782 = vst [vmem:[%s287] sm:$0xff] %v780
        %783 = vst [vmem:[%s287 + $0x8] sm:$0xff] %v781
        %v784 = vlaneseq
        %v785 = vshrl.u32 %v784, 7
        %v786 = vsub.s32 4, %v785
        %v787 = vrot.slane %v705, %v786
        %v788 = vlaneseq
        %v789 = vshrl.u32 %v788, 7
        %v790 = vsub.s32 4, %v789
        %v791 = vrot.slane %v706, %v790
        %v792 = vmul.f32 %v710, %v787
        %v793 = vmul.f32 %v710, %v791
        %v794 = vadd.f32 %v792, 0.0
        %v795 = vadd.f32 %v793, 0.0
        %v796 = vlaneseq
        %v797 = vshrl.u32 %v796, 7
        %v798 = vsub.s32 5, %v797
        %v799 = vrot.slane %v705, %v798
        %v800 = vlaneseq
        %v801 = vshrl.u32 %v800, 7
        %v802 = vsub.s32 5, %v801
        %v803 = vrot.slane %v706, %v802
        %v804 = vmul.f32 %v727, %v799
        %v805 = vmul.f32 %v727, %v803
        %v806 = vadd.f32 %v794, %v804
        %v807 = vadd.f32 %v795, %v805
        %v808 = vlaneseq
        %v809 = vshrl.u32 %v808, 7
        %v810 = vsub.s32 6, %v809
        %v811 = vrot.slane %v705, %v810
        %v812 = vlaneseq
        %v813 = vshrl.u32 %v812, 7
        %v814 = vsub.s32 6, %v813
        %v815 = vrot.slane %v706, %v814
        %v816 = vmul.f32 %v744, %v811
        %v817 = vmul.f32 %v744, %v815
        %v818 = vadd.f32 %v806, %v816
        %v819 = vadd.f32 %v807, %v817
        %v820 = vlaneseq
        %v821 = vshrl.u32 %v820, 7
        %v822 = vsub.s32 7, %v821
        %v823 = vrot.slane %v705, %v822
        %v824 = vlaneseq
        %v825 = vshrl.u32 %v824, 7
        %v826 = vsub.s32 7, %v825
        %v827 = vrot.slane %v706, %v826
        %v828 = vmul.f32 %v761, %v823
        %v829 = vmul.f32 %v761, %v827
        %v830 = vadd.f32 %v818, %v828
        %v831 = vadd.f32 %v819, %v829
        %v832 = vadd.f32 %v830, %v778
        %v833 = vadd.f32 %v831, %v778
        %834 = vst [vmem:[%s287 + $0x10] sm:$0xff] %v832
        %835 = vst [vmem:[%s287 + $0x18] sm:$0xff] %v833
      $region56: #{separable_conv2d.1} parent=43 // pred_fallthru
        _
      %p836 = scmp.eq.s32.totalorder %s21, 0
      %s837 = scalar_select %p836, 0, %s22
      %s838 = smul.u32 2, %s837
      %p839 = scmp.lt.s32.totalorder %s838, 1
      %s840 = scalar_select %p839, %s838, 1
      %s841 = smul.addr %s840, 2
      %s842 = smul.addr %s841, 8
      %s843 = scalar_lea.vmem %s6, %s842
      // Predicated region
      $region57: #{separable_conv2d.1} parent=43 // pred_check
        %p844 = pneg %p186
      $region58: #{separable_conv2d.1} parent=43 // pred_check_branch
        %846 = sbr.rel (%p844) target = $region60
      $region59: #{separable_conv2d.1} parent=43 // pred_region
        %p847 = scmp.eq.s32.totalorder %s21, 0
        %s848 = scalar_select %p847, 0, %s22
        %s849 = smul.u32 2, %s848
      $region60: #{separable_conv2d.1} parent=43 // pred_fallthru
        _
    $region44: #{separable_conv2d.1} parent=5 // pred_fallthru
      _
    %p850 = scmp.le.s32.totalorder 2, %s12
    // Predicated region
    $region61: #{separable_conv2d.1} parent=5 // pred_check
      %p851 = pneg %p850
    $region62: #{separable_conv2d.1} parent=5 // pred_check_branch
      %853 = sbr.rel (%p851) target = $region64
    $region63: #{separable_conv2d.1} parent=5 // pred_region
      %s854 = ssub.s32 %s12, 2
      // Predicated region
      $region65: #{separable_conv2d.1} parent=63 // pred_check
        %p855 = pneg %p192
      $region66: #{separable_conv2d.1} parent=63 // pred_check_branch
        %857 = sbr.rel (%p855) target = $region68
      $region67: #{separable_conv2d.1} parent=63 // pred_region
        %p858 = scmp.eq.s32.totalorder %s23, 0
        %s859 = scalar_select %p858, 0, %s24
        %s860 = smul.u32 2, %s859
        %p861 = scmp.lt.s32.totalorder %s860, 1
        %s862 = scalar_select %p861, %s860, 1
        %s863 = smul.addr %s862, 2
        %s864 = smul.addr %s863, 8
        %s865 = scalar_lea.vmem %s6, %s864
      $region68: #{separable_conv2d.1} parent=63 // pred_fallthru
        _
    $region64: #{separable_conv2d.1} parent=5 // pred_fallthru
      _
  $region6: #{separable_conv2d.1} parent=0 // loop_footer
    %s16 = sadd.s32 1, %s12
  $region7: #{separable_conv2d.1} parent=0 // loop_footer_branch
    %11 = sbr.rel target = $region3
  $region8: #{separable_conv2d.1} parent=0 // loop_exit
    _

</llo_original>
